<compile_context>
chip_gen: v6e
topology: v6e:2x2x1
jax: 0.10.0
libtpu: 0.0.40
codegen_flags: <defaults>
</compile_context>

<pallas_src>
import jax
import jax.numpy as jnp
from jax.experimental import pallas as pl
from jax.experimental.pallas import tpu as pltpu

HIDDEN = (32, 16, 8)
LANE = 128


def _round_up(x, m):
    return (x + m - 1) // m * m


def _cdiv(a, b):
    return (a + b - 1) // b


def make_qnet_kernel(hidden, action_size):
    """Builds the kernel for a given layer-size configuration.

    Ref order: state_T, W_fused, Wx_1..Wx_L, out.
      state_T : (S_aug_pad, TB)   batch on lanes, state features (+1 bias row) on sublanes
      W_fused : (sum(out)+pad, S_aug_pad)  all state-side weights + biases, fused
      Wx_l    : (out_l, out_{l-1})         hidden-side weights (transposed)
      out     : (A, TB)
    """
    sizes = list(hidden) + [action_size]
    offs = [0]
    for s in sizes:
        offs.append(offs[-1] + s)
    n_wx = len(sizes) - 1

    def kernel(*refs):
        s_ref = refs[0]
        wfused_ref = refs[1]
        wx_refs = refs[2:2 + n_wx]
        out_ref = refs[2 + n_wx]

        f32 = jnp.float32
        s = s_ref[...]                      # (S_aug_pad, TB), mm dtype
        mm = s.dtype                        # MXU operand dtype (f32 or bf16)

        # One fused MXU pass: every layer's state contribution + its bias.
        h = jnp.dot(wfused_ref[...], s, preferred_element_type=f32)   # (sum+pad, TB)

        # Layer 0.
        x = jnp.maximum(h[offs[0]:offs[1]], 0.0)                      # (32, TB)

        # Layers 1..L-1 (ReLU) and the final logits layer.
        logits = None
        for li in range(1, len(sizes)):
            pre = h[offs[li]:offs[li + 1]] + jnp.dot(
                wx_refs[li - 1][...], x.astype(mm), preferred_element_type=f32)
            if li < len(sizes) - 1:
                x = jnp.maximum(pre, 0.0)
            else:
                logits = pre                                          # (A, TB)

        # Softmax over the (tiny) sublane axis; exact division so rows sum to 1.
        m = jnp.max(logits, axis=0, keepdims=True)
        e = jnp.exp(logits - m)
        denom = jnp.sum(e, axis=0, keepdims=True)
        out_ref[...] = (e / denom).astype(out_ref.dtype)

    return kernel


def init_params(key, state_size, action_size, hidden=HIDDEN):
    """nn.Linear-style init (U[-1/sqrt(fan_in), 1/sqrt(fan_in)]).
    Weights stored as [in_features, out_features]; for layers >= 1 the first
    `state_size` rows correspond to the state part of cat([state, x])."""
    inputs = [state_size] + [h + state_size for h in hidden]
    outputs = list(hidden) + [action_size]
    params = []
    for fan_in, fan_out in zip(inputs, outputs):
        key, kw, kb = jax.random.split(key, 3)
        bound = 1.0 / jnp.sqrt(float(fan_in))
        w = jax.random.uniform(kw, (fan_in, fan_out), jnp.float32, -bound, bound)
        b = jax.random.uniform(kb, (1, fan_out), jnp.float32, -bound, bound)
        params.append((w, b))
    return params


def _prep_params(params, state_size, mm_dtype):
    """Fuse all state-side weights + biases into one transposed matrix and
    collect the transposed hidden-side weights.

    Returns:
      wfused : (round_up(sum(out), 8), round_up(S+1, 16))  mm_dtype
      wx     : list of (out_l, out_{l-1}) mm_dtype
    """
    ws_rows = []
    wx_list = []
    for li, (w, b) in enumerate(params):
        ws = w[:state_size]                                   # (S, out)
        ws_rows.append(jnp.concatenate([ws.T, b.T], axis=1))  # (out, S+1) bias folded
        if li > 0:
            wx_list.append(w[state_size:].T.astype(mm_dtype))  # (out, prev_hidden)
    wfused = jnp.concatenate(ws_rows, axis=0)                  # (sum(out), S+1)
    total_out, sa = wfused.shape
    sa_pad = _round_up(sa, 16)        # 16 covers f32 (8) and bf16 (16) sublane tiling
    to_pad = _round_up(total_out, 8)
    wfused = jnp.pad(wfused, ((0, to_pad - total_out), (0, sa_pad - sa)))
    return wfused.astype(mm_dtype), wx_list


def qnetwork_forward(state, params, *, tb=2048, compute_dtype=jnp.float32):
    batch, state_size = state.shape
    action_size = params[-1][0].shape[1]
    hidden = tuple(w.shape[1] for (w, _) in params[:-1])

    wfused, wx_list = _prep_params(params, state_size, compute_dtype)
    sa_pad = wfused.shape[1]

    # Lane tiling over the batch: tile is a multiple of 128 lanes, capped so a
    # large batch yields >= ~4 grid steps (v7x megacore + DMA/compute overlap).
    b_pad_min = _round_up(batch, LANE)
    tb = max(LANE, _round_up(min(tb, _cdiv(b_pad_min, 4)), LANE))
    b_pad = _round_up(batch, tb)
    grid = (b_pad // tb,)

    # Wrapper-side: augment with a constant-1 column (bias), zero-pad, transpose
    # so the batch lands on the lane axis, cast MXU operands.
    s32 = state.astype(jnp.float32)
    s_aug = jnp.concatenate([s32, jnp.ones((batch, 1), jnp.float32)], axis=1)
    s_aug = jnp.pad(s_aug, ((0, b_pad - batch), (0, sa_pad - (state_size + 1))))
    s_aug_t = s_aug.T.astype(compute_dtype)                    # (sa_pad, b_pad)

    state_spec = pl.BlockSpec((sa_pad, tb), lambda i: (0, i))
    # Constant block index -> weights DMA'd once, resident in VMEM across grid.
    weight_specs = [pl.BlockSpec(w.shape, lambda i: (0, 0))
                    for w in [wfused] + wx_list]
    out_spec = pl.BlockSpec((action_size, tb), lambda i: (0, i))

    # Advisory cost hint so XLA can overlap surrounding ops with this kernel.
    flops = 2 * batch * sum(int(w.size) for (w, _) in params)
    bytes_accessed = int(
        sa_pad * b_pad * jnp.dtype(compute_dtype).itemsize
        + action_size * b_pad * 4
        + int(wfused.size) * wfused.dtype.itemsize
        + sum(int(w.size) * w.dtype.itemsize for w in wx_list))
    cost = pl.CostEstimate(flops=flops,
                           transcendentals=batch * action_size,
                           bytes_accessed=bytes_accessed)

    kernel = make_qnet_kernel(hidden, action_size)

    out_t = pl.pallas_call(
        kernel,
        out_shape=jax.ShapeDtypeStruct((action_size, b_pad), jnp.float32),
        grid=grid,
        in_specs=[state_spec] + weight_specs,
        out_specs=out_spec,
        compiler_params=pltpu.CompilerParams(
            dimension_semantics=("parallel",)),   # megacore sharding on v7x
        cost_estimate=cost,
    )(s_aug_t, wfused, *wx_list)

    return out_t.T[:batch]


def qnetwork_forward_ref(state, params, compute_dtype=jnp.float32):
    """Pure-JAX reference; mimics the kernel's operand rounding to
    compute_dtype (f32 accumulation / activations / softmax)."""
    rnd = lambda a: a.astype(compute_dtype).astype(jnp.float32)
    s = rnd(state)
    w0, b0 = params[0]
    x = jax.nn.relu(s @ rnd(w0) + rnd(b0))
    for w, b in params[1:-1]:
        x = jax.nn.relu(jnp.concatenate([s, rnd(x)], 1) @ rnd(w) + rnd(b))
    w, b = params[-1]
    logits = jnp.concatenate([s, rnd(x)], 1) @ rnd(w) + rnd(b)
    return jax.nn.softmax(logits, axis=1)


if __name__ == "__main__":
    key = jax.random.PRNGKey(0)
    k_state, k_params, k_big = jax.random.split(key, 3)

    batch = 8
    state_size = 8
    action_size = 4

    state = jax.random.normal(k_state, (batch, state_size), jnp.float32)
    params = init_params(k_params, state_size, action_size, hidden=HIDDEN)

    # f32 path
    out = jax.block_until_ready(qnetwork_forward(state, params))
    ref = qnetwork_forward_ref(state, params)
    assert out.shape == (batch, action_size)
    assert jnp.allclose(out, ref, atol=1e-3, rtol=1e-3), "f32 mismatch vs reference"
    assert jnp.allclose(jnp.sum(out, axis=1), 1.0, atol=1e-4), "rows must sum to 1"

    # bf16 MXU-operand path (HBM-bandwidth / MXU-pass optimization, all gens incl. v5e)
    out_bf = jax.block_until_ready(
        qnetwork_forward(state, params, compute_dtype=jnp.bfloat16))
    ref_bf = qnetwork_forward_ref(state, params, compute_dtype=jnp.bfloat16)
    assert jnp.allclose(out_bf, ref_bf, atol=2e-2, rtol=2e-2), "bf16 mismatch"
    assert jnp.allclose(jnp.sum(out_bf, axis=1), 1.0, atol=1e-4), "bf16 rows must sum to 1"

    # Multi-tile grid + ragged-tail padding path (tb gets capped -> 4 grid steps)
    big_state = jax.random.normal(k_big, (1000, state_size), jnp.float32)
    out_big = jax.block_until_ready(qnetwork_forward(big_state, params))
    ref_big = qnetwork_forward_ref(big_state, params)
    assert out_big.shape == (1000, action_size)
    assert jnp.allclose(out_big, ref_big, atol=1e-3, rtol=1e-3), "gridded mismatch"
    assert jnp.allclose(jnp.sum(out_big, axis=1), 1.0, atol=1e-4), "gridded rows must sum to 1"

    print("KERNEL_OK")
</pallas_src>

<mosaic_0001>
module attributes {stable_mosaic.version = 11 : i64} {
  func.func @kernel(%arg0: i32, %arg1: memref<16x128xf32, #tpu.memory_space<vmem>>, %arg2: memref<64x16xf32, #tpu.memory_space<vmem>>, %arg3: memref<16x32xf32, #tpu.memory_space<vmem>>, %arg4: memref<8x16xf32, #tpu.memory_space<vmem>>, %arg5: memref<4x8xf32, #tpu.memory_space<vmem>>, %arg6: memref<4x128xf32, #tpu.memory_space<vmem>>) attributes {dimension_semantics = [#tpu.dimension_semantics<parallel>], iteration_bounds = array<i64: 1>, scalar_prefetch = 0 : i64, scratch_operands = 0 : i64, tpu.core_type = #tpu.core_type<tc>, window_params = [{transform_indices = @transform_0, window_bounds = array<i64: 16, 128>}, {pipeline_mode = #tpu.pipeline_mode<synchronous>, transform_indices = @transform_1, window_bounds = array<i64: 64, 16>}, {pipeline_mode = #tpu.pipeline_mode<synchronous>, transform_indices = @transform_2, window_bounds = array<i64: 16, 32>}, {pipeline_mode = #tpu.pipeline_mode<synchronous>, transform_indices = @transform_3, window_bounds = array<i64: 8, 16>}, {pipeline_mode = #tpu.pipeline_mode<synchronous>, transform_indices = @transform_4, window_bounds = array<i64: 4, 8>}, {transform_indices = @transform_5, window_bounds = array<i64: 4, 128>}]} {
    %c0 = arith.constant 0 : index
    %c0_0 = arith.constant 0 : index
    %0 = vector.load %arg1[%c0, %c0_0] : memref<16x128xf32, #tpu.memory_space<vmem>>, vector<16x128xf32>
    %c0_1 = arith.constant 0 : index
    %c0_2 = arith.constant 0 : index
    %1 = vector.load %arg2[%c0_1, %c0_2] : memref<64x16xf32, #tpu.memory_space<vmem>>, vector<64x16xf32>
    %cst = arith.constant dense<0.000000e+00> : vector<64x128xf32>
    %2 = tpu.matmul %1, %0, %cst {dimension_numbers = #tpu.dot_dimension_numbers<[1], [0], [0], [1], [0, 0, 1, 1], [], []>} : vector<64x16xf32>, vector<16x128xf32>, vector<64x128xf32> -> vector<64x128xf32>
    %3 = vector.extract_strided_slice %2 {offsets = [0, 0], sizes = [32, 128], strides = [1, 1]} : vector<64x128xf32> to vector<32x128xf32>
    %cst_3 = arith.constant 0.000000e+00 : f32
    %4 = vector.broadcast %cst_3 : f32 to vector<32x128xf32>
    %5 = arith.maximumf %3, %4 : vector<32x128xf32>
    %6 = vector.extract_strided_slice %2 {offsets = [32, 0], sizes = [16, 128], strides = [1, 1]} : vector<64x128xf32> to vector<16x128xf32>
    %c0_4 = arith.constant 0 : index
    %c0_5 = arith.constant 0 : index
    %7 = vector.load %arg3[%c0_4, %c0_5] : memref<16x32xf32, #tpu.memory_space<vmem>>, vector<16x32xf32>
    %cst_6 = arith.constant dense<0.000000e+00> : vector<16x128xf32>
    %8 = tpu.matmul %7, %5, %cst_6 {dimension_numbers = #tpu.dot_dimension_numbers<[1], [0], [0], [1], [0, 0, 1, 1], [], []>} : vector<16x32xf32>, vector<32x128xf32>, vector<16x128xf32> -> vector<16x128xf32>
    %9 = arith.addf %6, %8 : vector<16x128xf32>
    %cst_7 = arith.constant 0.000000e+00 : f32
    %10 = vector.broadcast %cst_7 : f32 to vector<16x128xf32>
    %11 = arith.maximumf %9, %10 : vector<16x128xf32>
    %12 = vector.extract_strided_slice %2 {offsets = [48, 0], sizes = [8, 128], strides = [1, 1]} : vector<64x128xf32> to vector<8x128xf32>
    %c0_8 = arith.constant 0 : index
    %c0_9 = arith.constant 0 : index
    %13 = vector.load %arg4[%c0_8, %c0_9] : memref<8x16xf32, #tpu.memory_space<vmem>>, vector<8x16xf32>
    %cst_10 = arith.constant dense<0.000000e+00> : vector<8x128xf32>
    %14 = tpu.matmul %13, %11, %cst_10 {dimension_numbers = #tpu.dot_dimension_numbers<[1], [0], [0], [1], [0, 0, 1, 1], [], []>} : vector<8x16xf32>, vector<16x128xf32>, vector<8x128xf32> -> vector<8x128xf32>
    %15 = arith.addf %12, %14 : vector<8x128xf32>
    %cst_11 = arith.constant 0.000000e+00 : f32
    %16 = vector.broadcast %cst_11 : f32 to vector<8x128xf32>
    %17 = arith.maximumf %15, %16 : vector<8x128xf32>
    %18 = vector.extract_strided_slice %2 {offsets = [56, 0], sizes = [4, 128], strides = [1, 1]} : vector<64x128xf32> to vector<4x128xf32>
    %c0_12 = arith.constant 0 : index
    %c0_13 = arith.constant 0 : index
    %19 = vector.load %arg5[%c0_12, %c0_13] : memref<4x8xf32, #tpu.memory_space<vmem>>, vector<4x8xf32>
    %cst_14 = arith.constant dense<0.000000e+00> : vector<4x128xf32>
    %20 = tpu.matmul %19, %17, %cst_14 {dimension_numbers = #tpu.dot_dimension_numbers<[1], [0], [0], [1], [0, 0, 1, 1], [], []>} : vector<4x8xf32>, vector<8x128xf32>, vector<4x128xf32> -> vector<4x128xf32>
    %21 = arith.addf %18, %20 : vector<4x128xf32>
    %cst_15 = arith.constant dense<0xFF800000> : vector<128xf32>
    %22 = vector.multi_reduction <maximumf>, %21, %cst_15 [0] : vector<4x128xf32> to vector<128xf32>
    %23 = vector.shape_cast %22 : vector<128xf32> to vector<1x128xf32>
    %24 = vector.broadcast %23 : vector<1x128xf32> to vector<4x128xf32>
    %25 = arith.subf %21, %24 : vector<4x128xf32>
    %26 = math.exp %25 : vector<4x128xf32>
    %cst_16 = arith.constant dense<0.000000e+00> : vector<128xf32>
    %27 = vector.multi_reduction <add>, %26, %cst_16 [0] : vector<4x128xf32> to vector<128xf32>
    %28 = vector.shape_cast %27 : vector<128xf32> to vector<1x128xf32>
    %29 = vector.broadcast %28 : vector<1x128xf32> to vector<4x128xf32>
    %30 = arith.divf %26, %29 : vector<4x128xf32>
    %c0_17 = arith.constant 0 : index
    %c0_18 = arith.constant 0 : index
    %31 = vector.load %arg6[%c0_17, %c0_18] : memref<4x128xf32, #tpu.memory_space<vmem>>, vector<4x128xf32>
    tpu.vector_store %arg6[%c0_17, %c0_18], %30 {strides = array<i32>} : memref<4x128xf32, #tpu.memory_space<vmem>>, vector<4x128xf32>,
    return
  }
  func.func @transform_0(%arg0: i32) -> (i32, i32) {
    %c0_i32 = arith.constant 0 : i32
    %c0_i32_0 = arith.constant 0 : i32
    return %c0_i32, %arg0 : i32, i32
  }
  func.func @transform_1(%arg0: i32) -> (i32, i32) {
    %c0_i32 = arith.constant 0 : i32
    %c0_i32_0 = arith.constant 0 : i32
    %c0_i32_1 = arith.constant 0 : i32
    return %c0_i32, %c0_i32_0 : i32, i32
  }
  func.func @transform_2(%arg0: i32) -> (i32, i32) {
    %c0_i32 = arith.constant 0 : i32
    %c0_i32_0 = arith.constant 0 : i32
    %c0_i32_1 = arith.constant 0 : i32
    return %c0_i32, %c0_i32_0 : i32, i32
  }
  func.func @transform_3(%arg0: i32) -> (i32, i32) {
    %c0_i32 = arith.constant 0 : i32
    %c0_i32_0 = arith.constant 0 : i32
    %c0_i32_1 = arith.constant 0 : i32
    return %c0_i32, %c0_i32_0 : i32, i32
  }
  func.func @transform_4(%arg0: i32) -> (i32, i32) {
    %c0_i32 = arith.constant 0 : i32
    %c0_i32_0 = arith.constant 0 : i32
    %c0_i32_1 = arith.constant 0 : i32
    return %c0_i32, %c0_i32_0 : i32, i32
  }
  func.func @transform_5(%arg0: i32) -> (i32, i32) {
    %c0_i32 = arith.constant 0 : i32
    %c0_i32_0 = arith.constant 0 : i32
    return %c0_i32, %arg0 : i32, i32
  }
}

</mosaic_0001>

<llo_original>
// kernel: tpu_custom_call.1
$region0: #{tpu_custom_call.1}
  #allocation0 [shape = 'u32[]', space=smem, size = 0x4, offset = 0x4, fixed_abs, tag = 'smem constant byte address 0x4 - core index']
  #allocation1 [shape = 'u32[144,128]{1,0:T(1,128)}', space=vmem, size = 0x12000, scoped, tag = 'internal scratch']
  %s0 = inlined_call_operand.vmem [shape: f32[16,128], index: 0, kind: input, shape index: {}]
  %s1 = inlined_call_operand.vmem [shape: f32[64,16], index: 1, kind: input, shape index: {}]
  %s2 = inlined_call_operand.vmem [shape: f32[16,32], index: 2, kind: input, shape index: {}]
  %s3 = inlined_call_operand.vmem [shape: f32[8,16], index: 3, kind: input, shape index: {}]
  %s4 = inlined_call_operand.vmem [shape: f32[4,8], index: 4, kind: input, shape index: {}]
  %s5 = inlined_call_operand.hbm [shape: f32[4,128], index: 5, kind: output, shape index: {}]
  %s6 = sld [smem:[#allocation0]]
  $region30: #{tpu_custom_call.1} parent=0
    _
  %s8 = ssub.s32 1, %s6
  %s9 = scalar_select 0, %s8, %s6
  $region1: #{tpu_custom_call.1} parent=0
    #allocation2 [shape = 'u8[2048]{0}', space=vmem, size = 0x800, scoped, tag = 'output window, operand 0, single buffered']
    #allocation3 [shape = 's32[1]{0}', space=sflag, size = 0x4, scoped, tag = 'scoped memory for tpu_custom_call.1']
    %10 = vsyncpa [#allocation3], 0
    // Predicated region
    $region2: #{tpu_custom_call.1} parent=1 // pred_check
      _
    $region3: #{tpu_custom_call.1} parent=1 // pred_check_branch
      %12 = sbr.rel (0) target = $region5
    $region4: #{tpu_custom_call.1} parent=1 // pred_region
      _
    $region5: #{tpu_custom_call.1} parent=1 // pred_fallthru
      _
    // Predicated region
    $region6: #{tpu_custom_call.1} parent=1 // pred_check
      _
    $region7: #{tpu_custom_call.1} parent=1 // pred_check_branch
      %14 = sbr.rel (0) target = $region9
    $region8: #{tpu_custom_call.1} parent=1 // pred_region
      _
    $region9: #{tpu_custom_call.1} parent=1 // pred_fallthru
      _
    // Predicated region
    $region10: #{tpu_custom_call.1} parent=1 // pred_check
      _
    $region11: #{tpu_custom_call.1} parent=1 // pred_check_branch
      %16 = sbr.rel (0) target = $region13
    $region12: #{tpu_custom_call.1} parent=1 // pred_region
      _
    $region13: #{tpu_custom_call.1} parent=1 // pred_fallthru
      _
    // Predicated region
    $region14: #{tpu_custom_call.1} parent=1 // pred_check
      _
    $region15: #{tpu_custom_call.1} parent=1 // pred_check_branch
      %18 = sbr.rel (0) target = $region17
    $region16: #{tpu_custom_call.1} parent=1 // pred_region
      _
    $region17: #{tpu_custom_call.1} parent=1 // pred_fallthru
      _
    // Predicated region
    $region18: #{tpu_custom_call.1} parent=1 // pred_check
      _
    $region19: #{tpu_custom_call.1} parent=1 // pred_check_branch
      %20 = sbr.rel (0) target = $region21
    $region20: #{tpu_custom_call.1} parent=1 // pred_region
      _
    $region21: #{tpu_custom_call.1} parent=1 // pred_fallthru
      _
    %v21 = vld [vmem:[%s0] sm:$0xff]
    %v22 = vld [vmem:[%s0 + $0x8] sm:$0xff]
    %v23 = vld [vmem:[%s1] sm:$0xff]
    %v24 = vld [vmem:[%s1 + $0x8] sm:$0xff]
    %v25 = vld [vmem:[%s1 + $0x10] sm:$0xff]
    %v26 = vld [vmem:[%s1 + $0x18] sm:$0xff]
    %v27 = vld [vmem:[%s1 + $0x20] sm:$0xff]
    %v28 = vld [vmem:[%s1 + $0x28] sm:$0xff]
    %v29 = vld [vmem:[%s1 + $0x30] sm:$0xff]
    %v30 = vld [vmem:[%s1 + $0x38] sm:$0xff]
    %vm31 = vcmask 130048
    %v33 = vsel %vm31, %v23, 0
    %v36 = vsel %vm31, %v24, 0
    %v39 = vsel %vm31, %v25, 0
    %v42 = vsel %vm31, %v26, 0
    %v45 = vsel %vm31, %v27, 0
    %v48 = vsel %vm31, %v28, 0
    %v51 = vsel %vm31, %v29, 0
    %v54 = vsel %vm31, %v30, 0
    %56 = vmatprep.subr.mxu0 0.0
    %57 = vmatpush1.msra.mxu0 0.0
    %58 = vmatprep.subr.mxu0 0.0
    %59 = vmatpush1.msra.mxu0 0.0
    %60 = vmatprep.subr.mxu0 0.0
    %61 = vmatpush1.msra.mxu0 0.0
    %62 = vmatprep.subr.mxu0 0.0
    %63 = vmatpush1.msra.mxu0 0.0
    %64 = vmatprep.subr.mxu0 0.0
    %65 = vmatpush1.msra.mxu0 0.0
    %66 = vmatprep.subr.mxu0 0.0
    %67 = vmatpush1.msra.mxu0 0.0
    %68 = vmatprep.subr.mxu0 0.0
    %69 = vmatpush1.msra.mxu0 0.0
    %70 = vmatprep.subr.mxu0 0.0
    %71 = vmatpush1.msra.mxu0 0.0
    %72 = vmatprep.subr.mxu0 0.0
    %73 = vmatpush1.msra.mxu0 0.0
    %74 = vmatprep.subr.mxu0 0.0
    %75 = vmatpush1.msra.mxu0 0.0
    %76 = vmatprep.subr.mxu0 0.0
    %77 = vmatpush1.msra.mxu0 0.0
    %78 = vmatprep.subr.mxu0 0.0
    %79 = vmatpush1.msra.mxu0 0.0
    %80 = vmatprep.subr.mxu0 0.0
    %81 = vmatpush1.msra.mxu0 0.0
    %82 = vmatprep.subr.mxu0 0.0
    %83 = vmatpush1.msra.mxu0 0.0
    %84 = vmatprep.subr.mxu0 0.0
    %85 = vmatpush1.msra.mxu0 %v22
    %86 = vmatprep.subr.mxu0 0.0
    %87 = vmatpush1.msra.mxu0 %v21
    %88 = vmatprep.subr.mxu0 0.0
    %89 = vmatpush2.msra.mxu0 0.0
    %90 = vmatprep.subr.mxu0 0.0
    %91 = vmatpush2.msra.mxu0 0.0
    %92 = vmatprep.subr.mxu0 0.0
    %93 = vmatpush2.msra.mxu0 0.0
    %94 = vmatprep.subr.mxu0 0.0
    %95 = vmatpush2.msra.mxu0 0.0
    %96 = vmatprep.subr.mxu0 0.0
    %97 = vmatpush2.msra.mxu0 0.0
    %98 = vmatprep.subr.mxu0 0.0
    %99 = vmatpush2.msra.mxu0 0.0
    %100 = vmatprep.subr.mxu0 0.0
    %101 = vmatpush2.msra.mxu0 0.0
    %102 = vmatprep.subr.mxu0 0.0
    %103 = vmatpush2.msra.mxu0 0.0
    %104 = vmatprep.subr.mxu0 0.0
    %105 = vmatpush2.msra.mxu0 0.0
    %106 = vmatprep.subr.mxu0 0.0
    %107 = vmatpush2.msra.mxu0 0.0
    %108 = vmatprep.subr.mxu0 0.0
    %109 = vmatpush2.msra.mxu0 0.0
    %110 = vmatprep.subr.mxu0 0.0
    %111 = vmatpush2.msra.mxu0 0.0
    %112 = vmatprep.subr.mxu0 0.0
    %113 = vmatpush2.msra.mxu0 0.0
    %114 = vmatprep.subr.mxu0 0.0
    %115 = vmatpush2.msra.mxu0 0.0
    %116 = vmatprep.subr.mxu0 0.0
    %117 = vmatpush2.msra.mxu0 0.0
    %118 = vmatprep.subr.mxu0 0.0
    %119 = vmatpush2.msra.mxu0 0.0
    %120 = vmatprep.mubr.f32.mxu0 0.0
    %121 = vmatmul.mubr.f32.gmra.mxu0 %v33
    %v122 = vpop.f32.mrf.mxu0
    %v123 = vadd.f32 0.0, %v122
    %v124 = vpop.f32.mrf.mxu0
    %125 = vmatprep.mubr.f32.mxu0 0.0
    %126 = vmatmul.mubr.f32.gmra.mxu0 %v36
    %v127 = vpop.f32.mrf.mxu0
    %v128 = vadd.f32 0.0, %v127
    %v129 = vpop.f32.mrf.mxu0
    %130 = vmatprep.mubr.f32.mxu0 0.0
    %131 = vmatmul.mubr.f32.gmra.mxu0 %v39
    %v132 = vpop.f32.mrf.mxu0
    %v133 = vadd.f32 0.0, %v132
    %v134 = vpop.f32.mrf.mxu0
    %135 = vmatprep.mubr.f32.mxu0 0.0
    %136 = vmatmul.mubr.f32.gmra.mxu0 %v42
    %v137 = vpop.f32.mrf.mxu0
    %v138 = vadd.f32 0.0, %v137
    %v139 = vpop.f32.mrf.mxu0
    %140 = vmatprep.mubr.f32.mxu0 0.0
    %141 = vmatmul.mubr.f32.gmra.mxu0 %v45
    %v142 = vpop.f32.mrf.mxu0
    %v143 = vadd.f32 0.0, %v142
    %v144 = vpop.f32.mrf.mxu0
    %145 = vmatprep.mubr.f32.mxu0 0.0
    %146 = vmatmul.mubr.f32.gmra.mxu0 %v48
    %v147 = vpop.f32.mrf.mxu0
    %v148 = vadd.f32 0.0, %v147
    %v149 = vpop.f32.mrf.mxu0
    %150 = vmatprep.mubr.f32.mxu0 0.0
    %151 = vmatmul.mubr.f32.gmra.mxu0 %v51
    %v152 = vpop.f32.mrf.mxu0
    %v153 = vadd.f32 0.0, %v152
    %v154 = vpop.f32.mrf.mxu0
    %155 = vmatprep.mubr.f32.mxu0 0.0
    %156 = vmatmul.mubr.f32.gmra.mxu0 %v54
    %v157 = vpop.f32.mrf.mxu0
    %v158 = vadd.f32 0.0, %v157
    %v159 = vpop.f32.mrf.mxu0
    %160 = vdwg.mxu0
    %v161 = vmax.f32 %v123, 0.0
    %v162 = vmax.f32 %v128, 0.0
    %v163 = vmax.f32 %v133, 0.0
    %v164 = vmax.f32 %v138, 0.0
    %v165 = vld [vmem:[%s2] sm:$0xff]
    %v166 = vld [vmem:[%s2 + $0x8] sm:$0xff]
    %vm167 = vcmask 261120
    %v169 = vsel %vm167, %v165, 0
    %v172 = vsel %vm167, %v166, 0
    %174 = vmatprep.subr.mxu0 0.0
    %175 = vmatpush1.msra.mxu0 0.0
    %176 = vmatprep.subr.mxu0 0.0
    %177 = vmatpush1.msra.mxu0 0.0
    %178 = vmatprep.subr.mxu0 0.0
    %179 = vmatpush1.msra.mxu0 0.0
    %180 = vmatprep.subr.mxu0 0.0
    %181 = vmatpush1.msra.mxu0 0.0
    %182 = vmatprep.subr.mxu0 0.0
    %183 = vmatpush1.msra.mxu0 0.0
    %184 = vmatprep.subr.mxu0 0.0
    %185 = vmatpush1.msra.mxu0 0.0
    %186 = vmatprep.subr.mxu0 0.0
    %187 = vmatpush1.msra.mxu0 0.0
    %188 = vmatprep.subr.mxu0 0.0
    %189 = vmatpush1.msra.mxu0 0.0
    %190 = vmatprep.subr.mxu0 0.0
    %191 = vmatpush1.msra.mxu0 0.0
    %192 = vmatprep.subr.mxu0 0.0
    %193 = vmatpush1.msra.mxu0 0.0
    %194 = vmatprep.subr.mxu0 0.0
    %195 = vmatpush1.msra.mxu0 0.0
    %196 = vmatprep.subr.mxu0 0.0
    %197 = vmatpush1.msra.mxu0 0.0
    %198 = vmatprep.subr.mxu0 0.0
    %199 = vmatpush1.msra.mxu0 %v164
    %200 = vmatprep.subr.mxu0 0.0
    %201 = vmatpush1.msra.mxu0 %v163
    %202 = vmatprep.subr.mxu0 0.0
    %203 = vmatpush1.msra.mxu0 %v162
    %204 = vmatprep.subr.mxu0 0.0
    %205 = vmatpush1.msra.mxu0 %v161
    %206 = vmatprep.subr.mxu0 0.0
    %207 = vmatpush2.msra.mxu0 0.0
    %208 = vmatprep.subr.mxu0 0.0
    %209 = vmatpush2.msra.mxu0 0.0
    %210 = vmatprep.subr.mxu0 0.0
    %211 = vmatpush2.msra.mxu0 0.0
    %212 = vmatprep.subr.mxu0 0.0
    %213 = vmatpush2.msra.mxu0 0.0
    %214 = vmatprep.subr.mxu0 0.0
    %215 = vmatpush2.msra.mxu0 0.0
    %216 = vmatprep.subr.mxu0 0.0
    %217 = vmatpush2.msra.mxu0 0.0
    %218 = vmatprep.subr.mxu0 0.0
    %219 = vmatpush2.msra.mxu0 0.0
    %220 = vmatprep.subr.mxu0 0.0
    %221 = vmatpush2.msra.mxu0 0.0
    %222 = vmatprep.subr.mxu0 0.0
    %223 = vmatpush2.msra.mxu0 0.0
    %224 = vmatprep.subr.mxu0 0.0
    %225 = vmatpush2.msra.mxu0 0.0
    %226 = vmatprep.subr.mxu0 0.0
    %227 = vmatpush2.msra.mxu0 0.0
    %228 = vmatprep.subr.mxu0 0.0
    %229 = vmatpush2.msra.mxu0 0.0
    %230 = vmatprep.subr.mxu0 0.0
    %231 = vmatpush2.msra.mxu0 0.0
    %232 = vmatprep.subr.mxu0 0.0
    %233 = vmatpush2.msra.mxu0 0.0
    %234 = vmatprep.subr.mxu0 0.0
    %235 = vmatpush2.msra.mxu0 0.0
    %236 = vmatprep.subr.mxu0 0.0
    %237 = vmatpush2.msra.mxu0 0.0
    %238 = vmatprep.mubr.f32.mxu0 0.0
    %239 = vmatmul.mubr.f32.gmra.mxu0 %v169
    %v240 = vpop.f32.mrf.mxu0
    %v241 = vadd.f32 0.0, %v240
    %v242 = vpop.f32.mrf.mxu0
    %243 = vmatprep.mubr.f32.mxu0 0.0
    %244 = vmatmul.mubr.f32.gmra.mxu0 %v172
    %v245 = vpop.f32.mrf.mxu0
    %v246 = vadd.f32 0.0, %v245
    %v247 = vpop.f32.mrf.mxu0
    %248 = vdwg.mxu0
    %v249 = vadd.f32 %v143, %v241
    %v250 = vadd.f32 %v148, %v246
    %v251 = vmax.f32 %v249, 0.0
    %v252 = vmax.f32 %v250, 0.0
    %v253 = vld [vmem:[%s3] sm:$0xff]
    %v255 = vsel %vm31, %v253, 0
    %257 = vmatprep.subr.mxu0 0.0
    %258 = vmatpush1.msra.mxu0 0.0
    %259 = vmatprep.subr.mxu0 0.0
    %260 = vmatpush1.msra.mxu0 0.0
    %261 = vmatprep.subr.mxu0 0.0
    %262 = vmatpush1.msra.mxu0 0.0
    %263 = vmatprep.subr.mxu0 0.0
    %264 = vmatpush1.msra.mxu0 0.0
    %265 = vmatprep.subr.mxu0 0.0
    %266 = vmatpush1.msra.mxu0 0.0
    %267 = vmatprep.subr.mxu0 0.0
    %268 = vmatpush1.msra.mxu0 0.0
    %269 = vmatprep.subr.mxu0 0.0
    %270 = vmatpush1.msra.mxu0 0.0
    %271 = vmatprep.subr.mxu0 0.0
    %272 = vmatpush1.msra.mxu0 0.0
    %273 = vmatprep.subr.mxu0 0.0
    %274 = vmatpush1.msra.mxu0 0.0
    %275 = vmatprep.subr.mxu0 0.0
    %276 = vmatpush1.msra.mxu0 0.0
    %277 = vmatprep.subr.mxu0 0.0
    %278 = vmatpush1.msra.mxu0 0.0
    %279 = vmatprep.subr.mxu0 0.0
    %280 = vmatpush1.msra.mxu0 0.0
    %281 = vmatprep.subr.mxu0 0.0
    %282 = vmatpush1.msra.mxu0 0.0
    %283 = vmatprep.subr.mxu0 0.0
    %284 = vmatpush1.msra.mxu0 0.0
    %285 = vmatprep.subr.mxu0 0.0
    %286 = vmatpush1.msra.mxu0 %v252
    %287 = vmatprep.subr.mxu0 0.0
    %288 = vmatpush1.msra.mxu0 %v251
    %289 = vmatprep.subr.mxu0 0.0
    %290 = vmatpush2.msra.mxu0 0.0
    %291 = vmatprep.subr.mxu0 0.0
    %292 = vmatpush2.msra.mxu0 0.0
    %293 = vmatprep.subr.mxu0 0.0
    %294 = vmatpush2.msra.mxu0 0.0
    %295 = vmatprep.subr.mxu0 0.0
    %296 = vmatpush2.msra.mxu0 0.0
    %297 = vmatprep.subr.mxu0 0.0
    %298 = vmatpush2.msra.mxu0 0.0
    %299 = vmatprep.subr.mxu0 0.0
    %300 = vmatpush2.msra.mxu0 0.0
    %301 = vmatprep.subr.mxu0 0.0
    %302 = vmatpush2.msra.mxu0 0.0
    %303 = vmatprep.subr.mxu0 0.0
    %304 = vmatpush2.msra.mxu0 0.0
    %305 = vmatprep.subr.mxu0 0.0
    %306 = vmatpush2.msra.mxu0 0.0
    %307 = vmatprep.subr.mxu0 0.0
    %308 = vmatpush2.msra.mxu0 0.0
    %309 = vmatprep.subr.mxu0 0.0
    %310 = vmatpush2.msra.mxu0 0.0
    %311 = vmatprep.subr.mxu0 0.0
    %312 = vmatpush2.msra.mxu0 0.0
    %313 = vmatprep.subr.mxu0 0.0
    %314 = vmatpush2.msra.mxu0 0.0
    %315 = vmatprep.subr.mxu0 0.0
    %316 = vmatpush2.msra.mxu0 0.0
    %317 = vmatprep.subr.mxu0 0.0
    %318 = vmatpush2.msra.mxu0 0.0
    %319 = vmatprep.subr.mxu0 0.0
    %320 = vmatpush2.msra.mxu0 0.0
    %321 = vmatprep.mubr.f32.mxu0 0.0
    %322 = vmatmul.mubr.f32.gmra.mxu0 %v255
    %v323 = vpop.f32.mrf.mxu0
    %v324 = vadd.f32 0.0, %v323
    %v325 = vpop.f32.mrf.mxu0
    %326 = vdwg.mxu0
    %v327 = vadd.f32 %v153, %v324
    %v328 = vmax.f32 %v327, 0.0
    %v329 = vld [vmem:[%s4] sm:$0xf]
    %vm330 = vcmask 64512
    %v332 = vsel %vm330, %v329, 0
    %334 = vmatprep.subr.mxu0 0.0
    %335 = vmatpush1.msra.mxu0 0.0
    %336 = vmatprep.subr.mxu0 0.0
    %337 = vmatpush1.msra.mxu0 0.0
    %338 = vmatprep.subr.mxu0 0.0
    %339 = vmatpush1.msra.mxu0 0.0
    %340 = vmatprep.subr.mxu0 0.0
    %341 = vmatpush1.msra.mxu0 0.0
    %342 = vmatprep.subr.mxu0 0.0
    %343 = vmatpush1.msra.mxu0 0.0
    %344 = vmatprep.subr.mxu0 0.0
    %345 = vmatpush1.msra.mxu0 0.0
    %346 = vmatprep.subr.mxu0 0.0
    %347 = vmatpush1.msra.mxu0 0.0
    %348 = vmatprep.subr.mxu0 0.0
    %349 = vmatpush1.msra.mxu0 0.0
    %350 = vmatprep.subr.mxu0 0.0
    %351 = vmatpush1.msra.mxu0 0.0
    %352 = vmatprep.subr.mxu0 0.0
    %353 = vmatpush1.msra.mxu0 0.0
    %354 = vmatprep.subr.mxu0 0.0
    %355 = vmatpush1.msra.mxu0 0.0
    %356 = vmatprep.subr.mxu0 0.0
    %357 = vmatpush1.msra.mxu0 0.0
    %358 = vmatprep.subr.mxu0 0.0
    %359 = vmatpush1.msra.mxu0 0.0
    %360 = vmatprep.subr.mxu0 0.0
    %361 = vmatpush1.msra.mxu0 0.0
    %362 = vmatprep.subr.mxu0 0.0
    %363 = vmatpush1.msra.mxu0 0.0
    %364 = vmatprep.subr.mxu0 0.0
    %365 = vmatpush1.msra.mxu0 %v328
    %366 = vmatprep.subr.mxu0 0.0
    %367 = vmatpush2.msra.mxu0 0.0
    %368 = vmatprep.subr.mxu0 0.0
    %369 = vmatpush2.msra.mxu0 0.0
    %370 = vmatprep.subr.mxu0 0.0
    %371 = vmatpush2.msra.mxu0 0.0
    %372 = vmatprep.subr.mxu0 0.0
    %373 = vmatpush2.msra.mxu0 0.0
    %374 = vmatprep.subr.mxu0 0.0
    %375 = vmatpush2.msra.mxu0 0.0
    %376 = vmatprep.subr.mxu0 0.0
    %377 = vmatpush2.msra.mxu0 0.0
    %378 = vmatprep.subr.mxu0 0.0
    %379 = vmatpush2.msra.mxu0 0.0
    %380 = vmatprep.subr.mxu0 0.0
    %381 = vmatpush2.msra.mxu0 0.0
    %382 = vmatprep.subr.mxu0 0.0
    %383 = vmatpush2.msra.mxu0 0.0
    %384 = vmatprep.subr.mxu0 0.0
    %385 = vmatpush2.msra.mxu0 0.0
    %386 = vmatprep.subr.mxu0 0.0
    %387 = vmatpush2.msra.mxu0 0.0
    %388 = vmatprep.subr.mxu0 0.0
    %389 = vmatpush2.msra.mxu0 0.0
    %390 = vmatprep.subr.mxu0 0.0
    %391 = vmatpush2.msra.mxu0 0.0
    %392 = vmatprep.subr.mxu0 0.0
    %393 = vmatpush2.msra.mxu0 0.0
    %394 = vmatprep.subr.mxu0 0.0
    %395 = vmatpush2.msra.mxu0 0.0
    %396 = vmatprep.subr.mxu0 0.0
    %397 = vmatpush2.msra.mxu0 0.0
    %398 = vmatprep.mubr.f32.mxu0 0.0
    %399 = vmatmul.mubr.f32.gmra.mxu0 %v332
    %v400 = vpop.f32.mrf.mxu0
    %v401 = vadd.f32 0.0, %v400
    %v402 = vpop.f32.mrf.mxu0
    %403 = vdwg.mxu0
    %v404 = vadd.f32 %v158, %v401
    %vm405 = vcmask 1043456
    %v406 = vsel %vm405, %v404, -inf
    %v407 = vrot.slane %v406, 4
    %v408 = vmax.f32 %v406, %v407
    %v409 = vrot.slane %v408, 2
    %v410 = vmax.f32 %v408, %v409
    %v411 = vrot.slane %v410, 1
    %v412 = vmax.f32 %v410, %v411
    %v413 = vsub.f32 %v404, %v412
    %v414 = vmul.f32 %v413, 1.442695
    %v415 = vpow.pop %v414
    %v416 = vsel %vm405, %v415, 0.0
    %v417 = vrot.slane %v416, 4
    %v418 = vadd.f32 %v416, %v417
    %v419 = vrot.slane %v418, 2
    %v420 = vadd.f32 %v418, %v419
    %v421 = vrot.slane %v420, 1
    %v422 = vadd.f32 %v420, %v421
    %v423 = vrcp.pop %v422
    %v424 = vmul.f32 %v415, %v423
    %425 = vst [vmem:[#allocation2] sm:$0xf] %v424
    // Predicated region
    $region22: #{tpu_custom_call.1} parent=1 // pred_check
      _
    $region23: #{tpu_custom_call.1} parent=1 // pred_check_branch
      %427 = sbr.rel (0) target = $region25
    $region24: #{tpu_custom_call.1} parent=1 // pred_region
      %s429 = ssub.s32 64, 64
      %430 = vsyncadd [#allocation3], %s429
      %s432 = sshll.u32 [#allocation2], 4
      %s433 = int_to_ptr.vmem [resolvable:$true] %s432
      %435 = dma.vmem_to_hbm [thread:$0]  %s433, 64, %s5, [#allocation3]
    $region25: #{tpu_custom_call.1} parent=1 // pred_fallthru
      _
    // Predicated region
    $region26: #{tpu_custom_call.1} parent=1 // pred_check
      _
    $region27: #{tpu_custom_call.1} parent=1 // pred_check_branch
      %437 = sbr.rel (0) target = $region29
    $region28: #{tpu_custom_call.1} parent=1 // pred_region
      %438 = dma.done [#allocation3], 64
    $region29: #{tpu_custom_call.1} parent=1 // pred_fallthru
      _
    %439 = vsyncpa [#allocation3], 1

</llo_original>
